<compile_context>
chip_gen: v5e
topology: v5e:2x2
jax: 0.10.0
libtpu: 0.0.40
codegen_flags: <defaults>
</compile_context>

<pallas_src>
import numpy as np
import jax
import jax.numpy as jnp
from jax.experimental import pallas as pl
from jax.experimental.pallas import tpu as pltpu

POINT_SIZE = 16          # number of points / decoder output points (small test size)
HIDDEN = 32              # HIDDEN_DIM
LATENT = 16              # LATENT_DIM
STEP1 = HIDDEN // 4      # 8
STEP2 = HIDDEN // 2      # 16
EPS = 1e-5

# ---------------------------------------------------------------------------
# Parameter packing: every param lives in a fixed, 8-row aligned block of a
# single (PACK_ROWS, 128) f32 buffer.  Layouts:
#   GCN / conv weights : (in, out)   -> layer is  h @ W + b (bias as (1,out) row)
#   dec1 weight        : (out, in)   -> row-activation in,  column-activation out
#   dec2 weight        : (in, out)   -> column-activation in, row-activation out
#   dec3 weight        : (out, in)   -> row-activation in,  column-activation out
#   dec1/dec3 biases   : (out, 1) columns;  dec2 bias : (1, out) row
# ---------------------------------------------------------------------------
PARAM_SPECS = {
    "gw1": (2, STEP1),            "gb1": (1, STEP1),
    "gw2": (STEP1, STEP2),        "gb2": (1, STEP2),
    "gw3": (STEP2, HIDDEN),       "gb3": (1, HIDDEN),
    "cw1": (HIDDEN, HIDDEN),      "cb1": (1, HIDDEN),
    "g1": (1, HIDDEN),            "be1": (1, HIDDEN),
    "cw2": (HIDDEN, HIDDEN),      "cb2": (1, HIDDEN),
    "g2": (1, HIDDEN),            "be2": (1, HIDDEN),
    "cw3": (HIDDEN, LATENT),      "cb3": (1, LATENT),
    "g3": (1, LATENT),            "be3": (1, LATENT),
    "dw1": (HIDDEN, LATENT),      "db1": (HIDDEN, 1),
    "dw2": (HIDDEN, HIDDEN),      "db2": (1, HIDDEN),
    "dw3": (POINT_SIZE * 2, HIDDEN), "db3": (POINT_SIZE * 2, 1),
}


def _build_offsets(specs):
    offsets = {}
    off = 0
    for name, (r, c) in specs.items():
        offsets[name] = (off, r, c)
        off += -(-r // 8) * 8          # 8-row (sublane-tile) aligned blocks
    return offsets, -(-off // 8) * 8


OFFSETS, PACK_ROWS = _build_offsets(PARAM_SPECS)


def pack_params(params):
    buf = np.zeros((PACK_ROWS, 128), np.float32)
    for name, (off, r, c) in OFFSETS.items():
        arr = np.asarray(params[name], np.float32)
        assert arr.shape == (r, c), (name, arr.shape, (r, c))
        buf[off:off + r, :c] = arr
    return jnp.asarray(buf)


def _p(p_ref, name):
    """Static, tile-aligned slice of the packed parameter buffer (no copies)."""
    off, r, c = OFFSETS[name]
    return p_ref[off:off + r, 0:c]


# ---------------------------------------------------------------------------
# Kernel
# ---------------------------------------------------------------------------
def _bn_train(y, gamma, beta):
    """Single-pass BatchNorm1d (training statistics over the N points)."""
    c = y.shape[-1]
    inv_n = 1.0 / y.shape[0]
    # One sublane reduction over lane-concatenated [y, y*y]; var = E[y^2]-mean^2.
    s = jnp.sum(jnp.concatenate([y, y * y], axis=-1), axis=0, keepdims=True) * inv_n
    mean = s[:, :c]
    var = s[:, c:] - mean * mean
    return (y - mean) * jax.lax.rsqrt(var + EPS) * gamma + beta


def pcae_kernel(x_ref, a_ref, p_ref, out_ref):
    x = x_ref[...]                   # (N, 2) node coordinates
    a = a_ref[...]                   # (N, N) normalized adjacency (self loops included)

    # ---------------- GCN stack ----------------
    # gcn1: feature dim is only 2 -> expand the tiny-K contraction on the VPU,
    # then aggregate with the dense normalized adjacency on the MXU.
    gw1 = _p(p_ref, "gw1")                                            # (2, STEP1)
    h = x[:, 0:1] * gw1[0:1, :] + x[:, 1:2] * gw1[1:2, :]             # (N, STEP1)
    h = jnp.dot(a, h, preferred_element_type=jnp.float32) + _p(p_ref, "gb1")
    h = jnp.maximum(h, 0.0)

    h = jnp.dot(h, _p(p_ref, "gw2"), preferred_element_type=jnp.float32)   # (N, STEP2)
    h = jnp.dot(a, h, preferred_element_type=jnp.float32) + _p(p_ref, "gb2")
    h = jnp.maximum(h, 0.0)

    h = jnp.dot(h, _p(p_ref, "gw3"), preferred_element_type=jnp.float32)   # (N, HIDDEN)
    h = jnp.dot(a, h, preferred_element_type=jnp.float32) + _p(p_ref, "gb3")
    h = jnp.maximum(h, 0.0)

    # ------------- 1x1 conv + BN + ReLU stack -------------
    y = jnp.dot(h, _p(p_ref, "cw1"), preferred_element_type=jnp.float32) + _p(p_ref, "cb1")
    y = jnp.maximum(_bn_train(y, _p(p_ref, "g1"), _p(p_ref, "be1")), 0.0)
    # dropout(p=0.05): identity (eval semantics)

    y = jnp.dot(y, _p(p_ref, "cw2"), preferred_element_type=jnp.float32) + _p(p_ref, "cb2")
    y = jnp.maximum(_bn_train(y, _p(p_ref, "g2"), _p(p_ref, "be2")), 0.0)
    # dropout(p=0.05): identity (eval semantics)

    z = jnp.dot(y, _p(p_ref, "cw3"), preferred_element_type=jnp.float32) + _p(p_ref, "cb3")
    z = _bn_train(z, _p(p_ref, "g3"), _p(p_ref, "be3"))               # (N, LATENT), no relu

    # ------------- global max-pool over points -------------
    lat = jnp.max(z, axis=0, keepdims=True)                           # (1, LATENT) row

    # ------------------- MLP decoder (VPU/XLU only, no M=1 MXU pushes) -------
    # dec1: W (HIDDEN, LATENT), row input -> column output
    d1 = jnp.maximum(
        jnp.sum(_p(p_ref, "dw1") * lat, axis=1, keepdims=True) + _p(p_ref, "db1"), 0.0)
    # dec2: W (HIDDEN, HIDDEN), column input -> row output
    d2 = jnp.maximum(
        jnp.sum(d1 * _p(p_ref, "dw2"), axis=0, keepdims=True) + _p(p_ref, "db2"), 0.0)
    # dec3: W (OUT, HIDDEN), row input -> column output
    d3 = jnp.sum(_p(p_ref, "dw3") * d2, axis=1, keepdims=True) + _p(p_ref, "db3")
    out_ref[...] = d3                                                 # (POINT_SIZE*2, 1)


# ---------------------------------------------------------------------------
# Host-side glue
# ---------------------------------------------------------------------------
def gcn_norm_dense(edge_index, n):
    """Dense D^-1/2 (A + I) D^-1/2 like torch_geometric's gcn_norm (per graph)."""
    src = edge_index[0]
    dst = edge_index[1]
    A = jnp.zeros((n, n), jnp.float32).at[dst, src].add(1.0)   # A[dst, src] = edge weight
    A = A + jnp.eye(n, dtype=jnp.float32)                      # add self loops
    deg = A.sum(axis=1)
    dinv = jnp.where(deg > 0, jax.lax.rsqrt(deg), 0.0)
    return dinv[:, None] * A * dinv[None, :]


def init_params():
    keys = jax.random.split(jax.random.PRNGKey(42), len(PARAM_SPECS))
    params = {}
    for k, (name, (r, c)) in zip(keys, PARAM_SPECS.items()):
        if name in ("g1", "g2", "g3"):            # BN gamma default = 1
            params[name] = jnp.ones((r, c), jnp.float32)
        elif name in ("be1", "be2", "be3"):       # BN beta default = 0
            params[name] = jnp.zeros((r, c), jnp.float32)
        else:
            params[name] = (0.1 * jax.random.normal(k, (r, c))).astype(jnp.float32)
    return params


def pointcloud_ae_forward(x, a_norm, packed_params):
    """x: (B, 2, N) point clouds; a_norm: (B, N, N) precomputed normalized adjacency."""
    B, _, n = x.shape
    x_nodes = jnp.transpose(x, (0, 2, 1)).astype(jnp.float32)        # (B, N, 2)

    flops = B * (
        2 * n * (2 * STEP1 + STEP1 * STEP2 + STEP2 * HIDDEN)          # X @ W (GCN)
        + 2 * n * n * (STEP1 + STEP2 + HIDDEN)                        # A_norm @ h
        + 2 * n * (HIDDEN * HIDDEN * 2 + HIDDEN * LATENT)             # 1x1 conv stack
        + 2 * (LATENT * HIDDEN + HIDDEN * HIDDEN + HIDDEN * POINT_SIZE * 2))  # decoder
    bytes_accessed = 4 * (x_nodes.size + a_norm.size + B * POINT_SIZE * 2
                          + PACK_ROWS * 128)
    cost = pl.CostEstimate(flops=flops,
                           transcendentals=B * (2 * HIDDEN + LATENT),  # BN rsqrt
                           bytes_accessed=bytes_accessed)

    out = pl.pallas_call(
        pcae_kernel,
        out_shape=jax.ShapeDtypeStruct((B, POINT_SIZE * 2, 1), jnp.float32),
        grid=(B,),
        in_specs=[
            pl.BlockSpec((None, n, 2), lambda b: (b, 0, 0)),          # per-graph points
            pl.BlockSpec((None, n, n), lambda b: (b, 0, 0)),          # per-graph adjacency
            pl.BlockSpec((PACK_ROWS, 128), lambda b: (0, 0)),         # packed params (resident)
        ],
        out_specs=pl.BlockSpec((None, POINT_SIZE * 2, 1), lambda b: (b, 0, 0)),
        compiler_params=pltpu.CompilerParams(dimension_semantics=("parallel",)),
        cost_estimate=cost,
    )(x_nodes, a_norm, packed_params)
    return out.reshape(B, POINT_SIZE, 2)                              # (B, point_size, 2)


if __name__ == "__main__":
    key = jax.random.PRNGKey(0)
    kx, ke = jax.random.split(key)

    B = 2                                   # batch of independent graphs (parallel grid axis)
    E = 48
    # Input point clouds: (B, 2, N) -- matches x.squeeze(0).transpose(0,1) per graph.
    x = jax.random.normal(kx, (B, 2, POINT_SIZE), dtype=jnp.float32)
    # Random graphs on the N points: edge_index (B, 2, E).
    edge_index = jax.random.randint(ke, (B, 2, E), 0, POINT_SIZE, dtype=jnp.int32)

    params = init_params()
    packed = pack_params(params)
    # Adjacency precomputed ONCE per graph, outside the jitted hot path.
    a_norm = jax.vmap(lambda ei: gcn_norm_dense(ei, POINT_SIZE))(edge_index)
    a_norm = jax.block_until_ready(a_norm)

    fwd = jax.jit(pointcloud_ae_forward)
    out = jax.block_until_ready(fwd(x, a_norm, packed))

    assert out.shape == (B, POINT_SIZE, 2), out.shape
    assert bool(jnp.all(jnp.isfinite(out)))
    print("KERNEL_OK")
</pallas_src>

<mosaic_0001>
module attributes {stable_mosaic.version = 11 : i64} {
  func.func @pcae_kernel(%arg0: i32, %arg1: memref<1x16x2xf32, #tpu.memory_space<vmem>>, %arg2: memref<1x16x16xf32, #tpu.memory_space<vmem>>, %arg3: memref<392x128xf32, #tpu.memory_space<vmem>>, %arg4: memref<1x32x1xf32, #tpu.memory_space<vmem>>) attributes {dimension_semantics = [#tpu.dimension_semantics<parallel>], iteration_bounds = array<i64: 2>, scalar_prefetch = 0 : i64, scratch_operands = 0 : i64, tpu.core_type = #tpu.core_type<tc>, window_params = [{transform_indices = @transform_0, window_bounds = array<i64: 1, 16, 2>}, {transform_indices = @transform_1, window_bounds = array<i64: 1, 16, 16>}, {pipeline_mode = #tpu.pipeline_mode<synchronous>, transform_indices = @transform_2, window_bounds = array<i64: 392, 128>}, {transform_indices = @transform_3, window_bounds = array<i64: 1, 32, 1>}]} {
    %c0 = arith.constant 0 : index
    %c0_0 = arith.constant 0 : index
    %c0_1 = arith.constant 0 : index
    %0 = vector.load %arg1[%c0, %c0_0, %c0_1] : memref<1x16x2xf32, #tpu.memory_space<vmem>>, vector<1x16x2xf32>
    %1 = vector.shape_cast %0 : vector<1x16x2xf32> to vector<16x2xf32>
    %c0_2 = arith.constant 0 : index
    %c0_3 = arith.constant 0 : index
    %c0_4 = arith.constant 0 : index
    %2 = vector.load %arg2[%c0_2, %c0_3, %c0_4] : memref<1x16x16xf32, #tpu.memory_space<vmem>>, vector<1x16x16xf32>
    %3 = vector.shape_cast %2 : vector<1x16x16xf32> to vector<16x16xf32>
    %c0_5 = arith.constant 0 : index
    %c0_6 = arith.constant 0 : index
    %4 = vector.load %arg3[%c0_5, %c0_6] : memref<392x128xf32, #tpu.memory_space<vmem>>, vector<2x8xf32>
    %5 = vector.extract_strided_slice %1 {offsets = [0, 0], sizes = [16, 1], strides = [1, 1]} : vector<16x2xf32> to vector<16x1xf32>
    %6 = vector.extract_strided_slice %4 {offsets = [0, 0], sizes = [1, 8], strides = [1, 1]} : vector<2x8xf32> to vector<1x8xf32>
    %7 = vector.broadcast %5 : vector<16x1xf32> to vector<16x8xf32>
    %8 = vector.broadcast %6 : vector<1x8xf32> to vector<16x8xf32>
    %9 = arith.mulf %7, %8 : vector<16x8xf32>
    %10 = vector.extract_strided_slice %1 {offsets = [0, 1], sizes = [16, 1], strides = [1, 1]} : vector<16x2xf32> to vector<16x1xf32>
    %11 = vector.extract_strided_slice %4 {offsets = [1, 0], sizes = [1, 8], strides = [1, 1]} : vector<2x8xf32> to vector<1x8xf32>
    %12 = vector.broadcast %10 : vector<16x1xf32> to vector<16x8xf32>
    %13 = vector.broadcast %11 : vector<1x8xf32> to vector<16x8xf32>
    %14 = arith.mulf %12, %13 : vector<16x8xf32>
    %15 = arith.addf %9, %14 : vector<16x8xf32>
    %cst = arith.constant dense<0.000000e+00> : vector<16x8xf32>
    %16 = tpu.matmul %3, %15, %cst {dimension_numbers = #tpu.dot_dimension_numbers<[1], [0], [0], [1], [0, 0, 1, 1], [], []>} : vector<16x16xf32>, vector<16x8xf32>, vector<16x8xf32> -> vector<16x8xf32>
    %c8 = arith.constant 8 : index
    %c0_7 = arith.constant 0 : index
    %17 = vector.load %arg3[%c8, %c0_7] : memref<392x128xf32, #tpu.memory_space<vmem>>, vector<1x8xf32>
    %18 = vector.broadcast %17 : vector<1x8xf32> to vector<16x8xf32>
    %19 = arith.addf %16, %18 : vector<16x8xf32>
    %cst_8 = arith.constant 0.000000e+00 : f32
    %20 = vector.broadcast %cst_8 : f32 to vector<16x8xf32>
    %21 = arith.maximumf %19, %20 : vector<16x8xf32>
    %c16 = arith.constant 16 : index
    %c0_9 = arith.constant 0 : index
    %22 = vector.load %arg3[%c16, %c0_9] : memref<392x128xf32, #tpu.memory_space<vmem>>, vector<8x16xf32>
    %cst_10 = arith.constant dense<0.000000e+00> : vector<16x16xf32>
    %23 = tpu.matmul %21, %22, %cst_10 {dimension_numbers = #tpu.dot_dimension_numbers<[1], [0], [0], [1], [0, 0, 1, 1], [], []>} : vector<16x8xf32>, vector<8x16xf32>, vector<16x16xf32> -> vector<16x16xf32>
    %cst_11 = arith.constant dense<0.000000e+00> : vector<16x16xf32>
    %24 = tpu.matmul %3, %23, %cst_11 {dimension_numbers = #tpu.dot_dimension_numbers<[1], [0], [0], [1], [0, 0, 1, 1], [], []>} : vector<16x16xf32>, vector<16x16xf32>, vector<16x16xf32> -> vector<16x16xf32>
    %c24 = arith.constant 24 : index
    %c0_12 = arith.constant 0 : index
    %25 = vector.load %arg3[%c24, %c0_12] : memref<392x128xf32, #tpu.memory_space<vmem>>, vector<1x16xf32>
    %26 = vector.broadcast %25 : vector<1x16xf32> to vector<16x16xf32>
    %27 = arith.addf %24, %26 : vector<16x16xf32>
    %cst_13 = arith.constant 0.000000e+00 : f32
    %28 = vector.broadcast %cst_13 : f32 to vector<16x16xf32>
    %29 = arith.maximumf %27, %28 : vector<16x16xf32>
    %c32 = arith.constant 32 : index
    %c0_14 = arith.constant 0 : index
    %30 = vector.load %arg3[%c32, %c0_14] : memref<392x128xf32, #tpu.memory_space<vmem>>, vector<16x32xf32>
    %cst_15 = arith.constant dense<0.000000e+00> : vector<16x32xf32>
    %31 = tpu.matmul %29, %30, %cst_15 {dimension_numbers = #tpu.dot_dimension_numbers<[1], [0], [0], [1], [0, 0, 1, 1], [], []>} : vector<16x16xf32>, vector<16x32xf32>, vector<16x32xf32> -> vector<16x32xf32>
    %cst_16 = arith.constant dense<0.000000e+00> : vector<16x32xf32>
    %32 = tpu.matmul %3, %31, %cst_16 {dimension_numbers = #tpu.dot_dimension_numbers<[1], [0], [0], [1], [0, 0, 1, 1], [], []>} : vector<16x16xf32>, vector<16x32xf32>, vector<16x32xf32> -> vector<16x32xf32>
    %c48 = arith.constant 48 : index
    %c0_17 = arith.constant 0 : index
    %33 = vector.load %arg3[%c48, %c0_17] : memref<392x128xf32, #tpu.memory_space<vmem>>, vector<1x32xf32>
    %34 = vector.broadcast %33 : vector<1x32xf32> to vector<16x32xf32>
    %35 = arith.addf %32, %34 : vector<16x32xf32>
    %cst_18 = arith.constant 0.000000e+00 : f32
    %36 = vector.broadcast %cst_18 : f32 to vector<16x32xf32>
    %37 = arith.maximumf %35, %36 : vector<16x32xf32>
    %c56 = arith.constant 56 : index
    %c0_19 = arith.constant 0 : index
    %38 = vector.load %arg3[%c56, %c0_19] : memref<392x128xf32, #tpu.memory_space<vmem>>, vector<32x32xf32>
    %cst_20 = arith.constant dense<0.000000e+00> : vector<16x32xf32>
    %39 = tpu.matmul %37, %38, %cst_20 {dimension_numbers = #tpu.dot_dimension_numbers<[1], [0], [0], [1], [0, 0, 1, 1], [], []>} : vector<16x32xf32>, vector<32x32xf32>, vector<16x32xf32> -> vector<16x32xf32>
    %c88 = arith.constant 88 : index
    %c0_21 = arith.constant 0 : index
    %40 = vector.load %arg3[%c88, %c0_21] : memref<392x128xf32, #tpu.memory_space<vmem>>, vector<1x32xf32>
    %41 = vector.broadcast %40 : vector<1x32xf32> to vector<16x32xf32>
    %42 = arith.addf %39, %41 : vector<16x32xf32>
    %c96 = arith.constant 96 : index
    %c0_22 = arith.constant 0 : index
    %43 = vector.load %arg3[%c96, %c0_22] : memref<392x128xf32, #tpu.memory_space<vmem>>, vector<1x32xf32>
    %c104 = arith.constant 104 : index
    %c0_23 = arith.constant 0 : index
    %44 = vector.load %arg3[%c104, %c0_23] : memref<392x128xf32, #tpu.memory_space<vmem>>, vector<1x32xf32>
    %45 = arith.mulf %42, %42 : vector<16x32xf32>
    %46 = tpu.concatenate %42, %45 in 1 : vector<16x32xf32>, vector<16x32xf32> -> vector<16x64xf32>
    %cst_24 = arith.constant dense<0.000000e+00> : vector<64xf32>
    %47 = vector.multi_reduction <add>, %46, %cst_24 [0] : vector<16x64xf32> to vector<64xf32>
    %48 = vector.shape_cast %47 : vector<64xf32> to vector<1x64xf32>
    %cst_25 = arith.constant 6.250000e-02 : f32
    %49 = vector.broadcast %cst_25 : f32 to vector<1x64xf32>
    %50 = arith.mulf %48, %49 : vector<1x64xf32>
    %51 = vector.extract_strided_slice %50 {offsets = [0, 0], sizes = [1, 32], strides = [1, 1]} : vector<1x64xf32> to vector<1x32xf32>
    %52 = vector.extract_strided_slice %50 {offsets = [0, 32], sizes = [1, 32], strides = [1, 1]} : vector<1x64xf32> to vector<1x32xf32>
    %53 = arith.mulf %51, %51 : vector<1x32xf32>
    %54 = arith.subf %52, %53 : vector<1x32xf32>
    %55 = vector.broadcast %51 : vector<1x32xf32> to vector<16x32xf32>
    %56 = arith.subf %42, %55 : vector<16x32xf32>
    %cst_26 = arith.constant 9.99999974E-6 : f32
    %57 = vector.broadcast %cst_26 : f32 to vector<1x32xf32>
    %58 = arith.addf %54, %57 : vector<1x32xf32>
    %59 = math.rsqrt %58 : vector<1x32xf32>
    %60 = vector.broadcast %59 : vector<1x32xf32> to vector<16x32xf32>
    %61 = arith.mulf %56, %60 : vector<16x32xf32>
    %62 = vector.broadcast %43 : vector<1x32xf32> to vector<16x32xf32>
    %63 = arith.mulf %61, %62 : vector<16x32xf32>
    %64 = vector.broadcast %44 : vector<1x32xf32> to vector<16x32xf32>
    %65 = arith.addf %63, %64 : vector<16x32xf32>
    %cst_27 = arith.constant 0.000000e+00 : f32
    %66 = vector.broadcast %cst_27 : f32 to vector<16x32xf32>
    %67 = arith.maximumf %65, %66 : vector<16x32xf32>
    %c112 = arith.constant 112 : index
    %c0_28 = arith.constant 0 : index
    %68 = vector.load %arg3[%c112, %c0_28] : memref<392x128xf32, #tpu.memory_space<vmem>>, vector<32x32xf32>
    %cst_29 = arith.constant dense<0.000000e+00> : vector<16x32xf32>
    %69 = tpu.matmul %67, %68, %cst_29 {dimension_numbers = #tpu.dot_dimension_numbers<[1], [0], [0], [1], [0, 0, 1, 1], [], []>} : vector<16x32xf32>, vector<32x32xf32>, vector<16x32xf32> -> vector<16x32xf32>
    %c144 = arith.constant 144 : index
    %c0_30 = arith.constant 0 : index
    %70 = vector.load %arg3[%c144, %c0_30] : memref<392x128xf32, #tpu.memory_space<vmem>>, vector<1x32xf32>
    %71 = vector.broadcast %70 : vector<1x32xf32> to vector<16x32xf32>
    %72 = arith.addf %69, %71 : vector<16x32xf32>
    %c152 = arith.constant 152 : index
    %c0_31 = arith.constant 0 : index
    %73 = vector.load %arg3[%c152, %c0_31] : memref<392x128xf32, #tpu.memory_space<vmem>>, vector<1x32xf32>
    %c160 = arith.constant 160 : index
    %c0_32 = arith.constant 0 : index
    %74 = vector.load %arg3[%c160, %c0_32] : memref<392x128xf32, #tpu.memory_space<vmem>>, vector<1x32xf32>
    %75 = arith.mulf %72, %72 : vector<16x32xf32>
    %76 = tpu.concatenate %72, %75 in 1 : vector<16x32xf32>, vector<16x32xf32> -> vector<16x64xf32>
    %cst_33 = arith.constant dense<0.000000e+00> : vector<64xf32>
    %77 = vector.multi_reduction <add>, %76, %cst_33 [0] : vector<16x64xf32> to vector<64xf32>
    %78 = vector.shape_cast %77 : vector<64xf32> to vector<1x64xf32>
    %cst_34 = arith.constant 6.250000e-02 : f32
    %79 = vector.broadcast %cst_34 : f32 to vector<1x64xf32>
    %80 = arith.mulf %78, %79 : vector<1x64xf32>
    %81 = vector.extract_strided_slice %80 {offsets = [0, 0], sizes = [1, 32], strides = [1, 1]} : vector<1x64xf32> to vector<1x32xf32>
    %82 = vector.extract_strided_slice %80 {offsets = [0, 32], sizes = [1, 32], strides = [1, 1]} : vector<1x64xf32> to vector<1x32xf32>
    %83 = arith.mulf %81, %81 : vector<1x32xf32>
    %84 = arith.subf %82, %83 : vector<1x32xf32>
    %85 = vector.broadcast %81 : vector<1x32xf32> to vector<16x32xf32>
    %86 = arith.subf %72, %85 : vector<16x32xf32>
    %cst_35 = arith.constant 9.99999974E-6 : f32
    %87 = vector.broadcast %cst_35 : f32 to vector<1x32xf32>
    %88 = arith.addf %84, %87 : vector<1x32xf32>
    %89 = math.rsqrt %88 : vector<1x32xf32>
    %90 = vector.broadcast %89 : vector<1x32xf32> to vector<16x32xf32>
    %91 = arith.mulf %86, %90 : vector<16x32xf32>
    %92 = vector.broadcast %73 : vector<1x32xf32> to vector<16x32xf32>
    %93 = arith.mulf %91, %92 : vector<16x32xf32>
    %94 = vector.broadcast %74 : vector<1x32xf32> to vector<16x32xf32>
    %95 = arith.addf %93, %94 : vector<16x32xf32>
    %cst_36 = arith.constant 0.000000e+00 : f32
    %96 = vector.broadcast %cst_36 : f32 to vector<16x32xf32>
    %97 = arith.maximumf %95, %96 : vector<16x32xf32>
    %c168 = arith.constant 168 : index
    %c0_37 = arith.constant 0 : index
    %98 = vector.load %arg3[%c168, %c0_37] : memref<392x128xf32, #tpu.memory_space<vmem>>, vector<32x16xf32>
    %cst_38 = arith.constant dense<0.000000e+00> : vector<16x16xf32>
    %99 = tpu.matmul %97, %98, %cst_38 {dimension_numbers = #tpu.dot_dimension_numbers<[1], [0], [0], [1], [0, 0, 1, 1], [], []>} : vector<16x32xf32>, vector<32x16xf32>, vector<16x16xf32> -> vector<16x16xf32>
    %c200 = arith.constant 200 : index
    %c0_39 = arith.constant 0 : index
    %100 = vector.load %arg3[%c200, %c0_39] : memref<392x128xf32, #tpu.memory_space<vmem>>, vector<1x16xf32>
    %101 = vector.broadcast %100 : vector<1x16xf32> to vector<16x16xf32>
    %102 = arith.addf %99, %101 : vector<16x16xf32>
    %c208 = arith.constant 208 : index
    %c0_40 = arith.constant 0 : index
    %103 = vector.load %arg3[%c208, %c0_40] : memref<392x128xf32, #tpu.memory_space<vmem>>, vector<1x16xf32>
    %c216 = arith.constant 216 : index
    %c0_41 = arith.constant 0 : index
    %104 = vector.load %arg3[%c216, %c0_41] : memref<392x128xf32, #tpu.memory_space<vmem>>, vector<1x16xf32>
    %105 = arith.mulf %102, %102 : vector<16x16xf32>
    %106 = tpu.concatenate %102, %105 in 1 : vector<16x16xf32>, vector<16x16xf32> -> vector<16x32xf32>
    %cst_42 = arith.constant dense<0.000000e+00> : vector<32xf32>
    %107 = vector.multi_reduction <add>, %106, %cst_42 [0] : vector<16x32xf32> to vector<32xf32>
    %108 = vector.shape_cast %107 : vector<32xf32> to vector<1x32xf32>
    %cst_43 = arith.constant 6.250000e-02 : f32
    %109 = vector.broadcast %cst_43 : f32 to vector<1x32xf32>
    %110 = arith.mulf %108, %109 : vector<1x32xf32>
    %111 = vector.extract_strided_slice %110 {offsets = [0, 0], sizes = [1, 16], strides = [1, 1]} : vector<1x32xf32> to vector<1x16xf32>
    %112 = vector.extract_strided_slice %110 {offsets = [0, 16], sizes = [1, 16], strides = [1, 1]} : vector<1x32xf32> to vector<1x16xf32>
    %113 = arith.mulf %111, %111 : vector<1x16xf32>
    %114 = arith.subf %112, %113 : vector<1x16xf32>
    %115 = vector.broadcast %111 : vector<1x16xf32> to vector<16x16xf32>
    %116 = arith.subf %102, %115 : vector<16x16xf32>
    %cst_44 = arith.constant 9.99999974E-6 : f32
    %117 = vector.broadcast %cst_44 : f32 to vector<1x16xf32>
    %118 = arith.addf %114, %117 : vector<1x16xf32>
    %119 = math.rsqrt %118 : vector<1x16xf32>
    %120 = vector.broadcast %119 : vector<1x16xf32> to vector<16x16xf32>
    %121 = arith.mulf %116, %120 : vector<16x16xf32>
    %122 = vector.broadcast %103 : vector<1x16xf32> to vector<16x16xf32>
    %123 = arith.mulf %121, %122 : vector<16x16xf32>
    %124 = vector.broadcast %104 : vector<1x16xf32> to vector<16x16xf32>
    %125 = arith.addf %123, %124 : vector<16x16xf32>
    %cst_45 = arith.constant dense<0xFF800000> : vector<16xf32>
    %126 = vector.multi_reduction <maximumf>, %125, %cst_45 [0] : vector<16x16xf32> to vector<16xf32>
    %127 = vector.shape_cast %126 : vector<16xf32> to vector<1x16xf32>
    %c224 = arith.constant 224 : index
    %c0_46 = arith.constant 0 : index
    %128 = vector.load %arg3[%c224, %c0_46] : memref<392x128xf32, #tpu.memory_space<vmem>>, vector<32x16xf32>
    %129 = vector.broadcast %127 : vector<1x16xf32> to vector<32x16xf32>
    %130 = arith.mulf %128, %129 : vector<32x16xf32>
    %cst_47 = arith.constant dense<0.000000e+00> : vector<32xf32>
    %131 = vector.multi_reduction <add>, %130, %cst_47 [1] : vector<32x16xf32> to vector<32xf32>
    %132 = vector.shape_cast %131 : vector<32xf32> to vector<32x1xf32>
    %c256 = arith.constant 256 : index
    %c0_48 = arith.constant 0 : index
    %133 = vector.load %arg3[%c256, %c0_48] : memref<392x128xf32, #tpu.memory_space<vmem>>, vector<32x1xf32>
    %134 = arith.addf %132, %133 : vector<32x1xf32>
    %cst_49 = arith.constant 0.000000e+00 : f32
    %135 = vector.broadcast %cst_49 : f32 to vector<32x1xf32>
    %136 = arith.maximumf %134, %135 : vector<32x1xf32>
    %c288 = arith.constant 288 : index
    %c0_50 = arith.constant 0 : index
    %137 = vector.load %arg3[%c288, %c0_50] : memref<392x128xf32, #tpu.memory_space<vmem>>, vector<32x32xf32>
    %138 = vector.broadcast %136 : vector<32x1xf32> to vector<32x32xf32>
    %139 = arith.mulf %138, %137 : vector<32x32xf32>
    %cst_51 = arith.constant dense<0.000000e+00> : vector<32xf32>
    %140 = vector.multi_reduction <add>, %139, %cst_51 [0] : vector<32x32xf32> to vector<32xf32>
    %141 = vector.shape_cast %140 : vector<32xf32> to vector<1x32xf32>
    %c320 = arith.constant 320 : index
    %c0_52 = arith.constant 0 : index
    %142 = vector.load %arg3[%c320, %c0_52] : memref<392x128xf32, #tpu.memory_space<vmem>>, vector<1x32xf32>
    %143 = arith.addf %141, %142 : vector<1x32xf32>
    %cst_53 = arith.constant 0.000000e+00 : f32
    %144 = vector.broadcast %cst_53 : f32 to vector<1x32xf32>
    %145 = arith.maximumf %143, %144 : vector<1x32xf32>
    %c328 = arith.constant 328 : index
    %c0_54 = arith.constant 0 : index
    %146 = vector.load %arg3[%c328, %c0_54] : memref<392x128xf32, #tpu.memory_space<vmem>>, vector<32x32xf32>
    %147 = vector.broadcast %145 : vector<1x32xf32> to vector<32x32xf32>
    %148 = arith.mulf %146, %147 : vector<32x32xf32>
    %cst_55 = arith.constant dense<0.000000e+00> : vector<32xf32>
    %149 = vector.multi_reduction <add>, %148, %cst_55 [1] : vector<32x32xf32> to vector<32xf32>
    %150 = vector.shape_cast %149 : vector<32xf32> to vector<32x1xf32>
    %c360 = arith.constant 360 : index
    %c0_56 = arith.constant 0 : index
    %151 = vector.load %arg3[%c360, %c0_56] : memref<392x128xf32, #tpu.memory_space<vmem>>, vector<32x1xf32>
    %152 = arith.addf %150, %151 : vector<32x1xf32>
    %c0_57 = arith.constant 0 : index
    %c0_58 = arith.constant 0 : index
    %c0_59 = arith.constant 0 : index
    %153 = vector.load %arg4[%c0_57, %c0_58, %c0_59] : memref<1x32x1xf32, #tpu.memory_space<vmem>>, vector<1x32x1xf32>
    %154 = vector.shape_cast %153 : vector<1x32x1xf32> to vector<32x1xf32>
    %155 = vector.shape_cast %152 : vector<32x1xf32> to vector<1x32x1xf32>
    tpu.vector_store %arg4[%c0_57, %c0_58, %c0_59], %155 {strides = array<i32>} : memref<1x32x1xf32, #tpu.memory_space<vmem>>, vector<1x32x1xf32>,
    return
  }
  func.func @transform_0(%arg0: i32) -> (i32, i32, i32) {
    %c0_i32 = arith.constant 0 : i32
    %c0_i32_0 = arith.constant 0 : i32
    %c0_i32_1 = arith.constant 0 : i32
    return %arg0, %c0_i32, %c0_i32_0 : i32, i32, i32
  }
  func.func @transform_1(%arg0: i32) -> (i32, i32, i32) {
    %c0_i32 = arith.constant 0 : i32
    %c0_i32_0 = arith.constant 0 : i32
    %c0_i32_1 = arith.constant 0 : i32
    return %arg0, %c0_i32, %c0_i32_0 : i32, i32, i32
  }
  func.func @transform_2(%arg0: i32) -> (i32, i32) {
    %c0_i32 = arith.constant 0 : i32
    %c0_i32_0 = arith.constant 0 : i32
    %c0_i32_1 = arith.constant 0 : i32
    return %c0_i32, %c0_i32_0 : i32, i32
  }
  func.func @transform_3(%arg0: i32) -> (i32, i32, i32) {
    %c0_i32 = arith.constant 0 : i32
    %c0_i32_0 = arith.constant 0 : i32
    %c0_i32_1 = arith.constant 0 : i32
    return %arg0, %c0_i32, %c0_i32_0 : i32, i32, i32
  }
}

</mosaic_0001>

<llo_original>
// kernel: pointcloud_ae_forward.1
$region0: #{pointcloud_ae_forward.1}
  #allocation0 [shape = 'u32[]', space=smem, size = 0x4, offset = 0x4, fixed_abs, tag = 'smem constant byte address 0x4 - core index']
  #allocation1 [shape = 'u32[72,128]{1,0:T(1,128)}', space=vmem, size = 0x9000, scoped, tag = 'internal scratch']
  %s0 = inlined_call_operand.vmem [shape: f32[2,16,2], index: 0, kind: input, shape index: {}]
  %s1 = inlined_call_operand.vmem [shape: f32[2,16,16], index: 1, kind: input, shape index: {}]
  %s2 = inlined_call_operand.hbm [shape: f32[392,128], index: 2, kind: input, shape index: {}]
  %s3 = inlined_call_operand.vmem [shape: f32[2,32,1], index: 3, kind: output, shape index: {}]
  %s4 = sld [smem:[#allocation0]]
  $region49: #{pointcloud_ae_forward.1} parent=0
    _
  %s6 = ssub.s32 1, %s4
  %s7 = scalar_select 0, %s6, %s4
  $region1: #{pointcloud_ae_forward.1} parent=0
    #allocation2 [shape = 'u8[200704]{0}', space=vmem, size = 0x31000, scoped, tag = 'input window, operand 2, single buffered']
    #allocation3 [shape = 's32[2]{0}', space=sflag, size = 0x8, scoped, tag = 'scoped memory for pointcloud_ae_forward.1']
    %8 = vsyncpa [#allocation3], 0
    loop: start=0, step=1, limit=4
    $region2: #{pointcloud_ae_forward.1} parent=1 // loop_pre_header
      _
    $region3: #{pointcloud_ae_forward.1} parent=1 // loop_header
      %s10 = sphi 0, %s14
      %p11 = scmp.ge.s32.totalorder %s10, 4
      %s20 = sphi 0, %s22
      %s23 = sphi 0, %s20
      %s24 = sphi 0, %s23
      %s40 = sphi 0, %s24
      %s46 = sphi 0, %s48
      %s49 = sphi 0, %s46
      %s50 = sphi 0, %s49
      %s66 = sphi 0, %s50
      %s70 = sphi 0, %s70
      %s72 = sphi 0, %s70
      %s73 = sphi 0, %s72
      %s87 = sphi 0, %s73
      %s93 = sphi 0, %s95
      %s96 = sphi 0, %s93
      %s97 = sphi 0, %s96
      %s113 = sphi 0, %s97
    $region4: #{pointcloud_ae_forward.1} parent=1 // loop_header_branch
      %13 = sbr.rel (%p11) target = $region8
    $region5: #{pointcloud_ae_forward.1} parent=1 // loop_body
      %s15 = ssub.s32 %s10, 1
      %s16 = ssub.s32 %s10, 2
      %s17 = sadd.s32 %s10, 1
      %s18 = ssub.s32 %s10, %s17
      %p19 = scmp.eq.s32.totalorder %s18, 0
      %s21 = sadd.s32 %s20, 1
      %s22 = scalar_select %p19, %s20, %s21
      %p25 = pneg %p19
      %p26 = scmp.eq.s32.totalorder %s10, 1
      %p27 = por %p25, %p26
      %p28 = scmp.ne.s32.totalorder %s20, %s23
      %p29 = scmp.eq.s32.totalorder %s10, 0
      %p30 = por %p28, %p29
      %p31 = scmp.ne.s32.totalorder %s20, %s23
      %p32 = scmp.eq.s32.totalorder %s15, 1
      %p33 = por %p31, %p32
      %p34 = scmp.ne.s32.totalorder %s23, %s24
      %p35 = scmp.eq.s32.totalorder %s15, 0
      %p36 = por %p34, %p35
      %p37 = scmp.ne.s32.totalorder %s23, %s24
      %p38 = scmp.eq.s32.totalorder %s16, 1
      %p39 = por %p37, %p38
      %p41 = scmp.ne.s32.totalorder %s24, %s40
      %p42 = scmp.eq.s32.totalorder %s16, 0
      %p43 = por %p41, %p42
      %s44 = ssub.s32 %s10, %s17
      %p45 = scmp.eq.s32.totalorder %s44, 0
      %s47 = sadd.s32 %s46, 1
      %s48 = scalar_select %p45, %s46, %s47
      %p51 = pneg %p45
      %p52 = scmp.eq.s32.totalorder %s10, 1
      %p53 = por %p51, %p52
      %p54 = scmp.ne.s32.totalorder %s46, %s49
      %p55 = scmp.eq.s32.totalorder %s10, 0
      %p56 = por %p54, %p55
      %p57 = scmp.ne.s32.totalorder %s46, %s49
      %p58 = scmp.eq.s32.totalorder %s15, 1
      %p59 = por %p57, %p58
      %p60 = scmp.ne.s32.totalorder %s49, %s50
      %p61 = scmp.eq.s32.totalorder %s15, 0
      %p62 = por %p60, %p61
      %p63 = scmp.ne.s32.totalorder %s49, %s50
      %p64 = scmp.eq.s32.totalorder %s16, 1
      %p65 = por %p63, %p64
      %p67 = scmp.ne.s32.totalorder %s50, %s66
      %p68 = scmp.eq.s32.totalorder %s16, 0
      %p69 = por %p67, %p68
      %s71 = sadd.s32 %s70, 1
      %p74 = scmp.eq.s32.totalorder %s10, 1
      %p75 = scmp.ne.s32.totalorder %s70, %s72
      %p76 = scmp.eq.s32.totalorder %s10, 0
      %p77 = por %p75, %p76
      %p78 = scmp.ne.s32.totalorder %s70, %s72
      %p79 = scmp.eq.s32.totalorder %s15, 1
      %p80 = por %p78, %p79
      %p81 = scmp.ne.s32.totalorder %s72, %s73
      %p82 = scmp.eq.s32.totalorder %s15, 0
      %p83 = por %p81, %p82
      %p84 = scmp.ne.s32.totalorder %s72, %s73
      %p85 = scmp.eq.s32.totalorder %s16, 1
      %p86 = por %p84, %p85
      %p88 = scmp.ne.s32.totalorder %s73, %s87
      %p89 = scmp.eq.s32.totalorder %s16, 0
      %p90 = por %p88, %p89
      %s91 = ssub.s32 %s10, %s17
      %p92 = scmp.eq.s32.totalorder %s91, 0
      %s94 = sadd.s32 %s93, 1
      %s95 = scalar_select %p92, %s93, %s94
      %p98 = pneg %p92
      %p99 = scmp.eq.s32.totalorder %s10, 1
      %p100 = por %p98, %p99
      %p101 = scmp.ne.s32.totalorder %s93, %s96
      %p102 = scmp.eq.s32.totalorder %s10, 0
      %p103 = por %p101, %p102
      %p104 = scmp.ne.s32.totalorder %s93, %s96
      %p105 = scmp.eq.s32.totalorder %s15, 1
      %p106 = por %p104, %p105
      %p107 = scmp.ne.s32.totalorder %s96, %s97
      %p108 = scmp.eq.s32.totalorder %s15, 0
      %p109 = por %p107, %p108
      %p110 = scmp.ne.s32.totalorder %s96, %s97
      %p111 = scmp.eq.s32.totalorder %s16, 1
      %p112 = por %p110, %p111
      %p114 = scmp.ne.s32.totalorder %s97, %s113
      %p115 = scmp.eq.s32.totalorder %s16, 0
      %p116 = por %p114, %p115
      %p117 = scmp.le.s32.totalorder 1, %s10
      %p118 = scmp.lt.s32.totalorder %s10, 3
      %p119 = pnand %p117, %p118
      %p120 = pneg %p119
      // Predicated region
      $region9: #{pointcloud_ae_forward.1} parent=5 // pred_check
        _
      $region10: #{pointcloud_ae_forward.1} parent=5 // pred_check_branch
        %122 = sbr.rel (%p119) target = $region12
      $region11: #{pointcloud_ae_forward.1} parent=5 // pred_region
        %s123 = ssub.s32 %s10, 1
        // Predicated region
        $region13: #{pointcloud_ae_forward.1} parent=11 // pred_check
          %p124 = pneg %p83
        $region14: #{pointcloud_ae_forward.1} parent=11 // pred_check_branch
          %126 = sbr.rel (%p124) target = $region16
        $region15: #{pointcloud_ae_forward.1} parent=11 // pred_region
          %128 = vsyncadd [#allocation3], 0
          %s129 = sshll.u32 %s2, 4
          %s130 = int_to_ptr.hbm [resolvable:$true] %s129
          %s131 = sshll.u32 [#allocation2], 4
          %s132 = int_to_ptr.vmem [resolvable:$true] %s131
          %137 = dma.hbm_to_vmem [thread:$0]  %s130, 6272, %s132, [#allocation3], 128, 128, 8
        $region16: #{pointcloud_ae_forward.1} parent=11 // pred_fallthru
          _
      $region12: #{pointcloud_ae_forward.1} parent=5 // pred_fallthru
        _
      %p138 = scmp.lt.s32.totalorder %s10, 2
      // Predicated region
      $region17: #{pointcloud_ae_forward.1} parent=5 // pred_check
        %p139 = pneg %p138
      $region18: #{pointcloud_ae_forward.1} parent=5 // pred_check_branch
        %141 = sbr.rel (%p139) target = $region20
      $region19: #{pointcloud_ae_forward.1} parent=5 // pred_region
        // Predicated region
        $region21: #{pointcloud_ae_forward.1} parent=19 // pred_check
          %p142 = pneg %p30
        $region22: #{pointcloud_ae_forward.1} parent=19 // pred_check_branch
          %144 = sbr.rel (%p142) target = $region24
        $region23: #{pointcloud_ae_forward.1} parent=19 // pred_region
          %p145 = scmp.lt.s32.totalorder %s10, 1
          %s146 = scalar_select %p145, %s10, 1
          %s147 = smul.addr %s146, 2
          %s148 = smul.addr %s147, 8
          %s149 = scalar_lea.vmem %s0, %s148
        $region24: #{pointcloud_ae_forward.1} parent=19 // pred_fallthru
          _
        // Predicated region
        $region25: #{pointcloud_ae_forward.1} parent=19 // pred_check
          %p150 = pneg %p56
        $region26: #{pointcloud_ae_forward.1} parent=19 // pred_check_branch
          %152 = sbr.rel (%p150) target = $region28
        $region27: #{pointcloud_ae_forward.1} parent=19 // pred_region
          %p153 = scmp.lt.s32.totalorder %s10, 1
          %s154 = scalar_select %p153, %s10, 1
          %s155 = smul.addr %s154, 2
          %s156 = smul.addr %s155, 8
          %s157 = scalar_lea.vmem %s1, %s156
        $region28: #{pointcloud_ae_forward.1} parent=19 // pred_fallthru
          _
      $region20: #{pointcloud_ae_forward.1} parent=5 // pred_fallthru
        _
      %p158 = scmp.le.s32.totalorder 1, %s10
      %p159 = scmp.lt.s32.totalorder %s10, 3
      %p160 = pnand %p158, %p159
      %p161 = pneg %p160
      // Predicated region
      $region29: #{pointcloud_ae_forward.1} parent=5 // pred_check
        _
      $region30: #{pointcloud_ae_forward.1} parent=5 // pred_check_branch
        %163 = sbr.rel (%p160) target = $region32
      $region31: #{pointcloud_ae_forward.1} parent=5 // pred_region
        %s164 = ssub.s32 %s10, 1
        // Predicated region
        $region33: #{pointcloud_ae_forward.1} parent=31 // pred_check
          %p165 = pneg %p83
        $region34: #{pointcloud_ae_forward.1} parent=31 // pred_check_branch
          %167 = sbr.rel (%p165) target = $region36
        $region35: #{pointcloud_ae_forward.1} parent=31 // pred_region
          %169 = dma.done [#allocation3], 6272
        $region36: #{pointcloud_ae_forward.1} parent=31 // pred_fallthru
          _
        %p170 = scmp.lt.s32.totalorder %s15, 1
        %s171 = scalar_select %p170, %s15, 1
        %s172 = smul.addr %s171, 2
        %s173 = smul.addr %s172, 8
        %s174 = scalar_lea.vmem %s0, %s173
        %p175 = pneg %p36
        %p176 = pneg %p33
        %p177 = scmp.lt.s32.totalorder %s15, 1
        %s178 = scalar_select %p177, %s15, 1
        %s179 = smul.addr %s178, 2
        %s180 = smul.addr %s179, 8
        %s181 = scalar_lea.vmem %s1, %s180
        %p182 = pneg %p62
        %p183 = pneg %p59
        %p184 = pneg %p83
        %p185 = pneg %p80
        %p186 = pneg %p109
        %p187 = pneg %p106
        %p188 = scmp.lt.s32.totalorder %s15, 1
        %s189 = scalar_select %p188, %s15, 1
        %s190 = smul.addr %s189, 4
        %s191 = smul.addr %s190, 8
        %s192 = scalar_lea.vmem %s3, %s191
        %p193 = scmp.lt.s32.totalorder %s15, 1
        %s194 = scalar_select %p193, %s15, 1
        %s195 = smul.addr %s194, 2
        %s196 = smul.addr %s195, 8
        %s197 = scalar_lea.vmem %s0, %s196
        %p198 = scmp.lt.s32.totalorder %s15, 1
        %s199 = scalar_select %p198, %s15, 1
        %s200 = smul.addr %s199, 2
        %s201 = smul.addr %s200, 8
        %s202 = scalar_lea.vmem %s1, %s201
        %p203 = scmp.lt.s32.totalorder %s15, 1
        %s204 = scalar_select %p203, %s15, 1
        %s205 = smul.addr %s204, 4
        %s206 = smul.addr %s205, 8
        %s207 = scalar_lea.vmem %s3, %s206
        %v208 = vld [vmem:[%s197] sm:$0xff]
        %v209 = vld [vmem:[%s197 + $0x8] sm:$0xff]
        %v210 = vld [vmem:[%s202] sm:$0xff]
        %v211 = vld [vmem:[%s202 + $0x8] sm:$0xff]
        %v212 = vld [vmem:[#allocation2] sm:$0x3]
        %214 = vset.pattern.permute.xlu0 0
        %215 = vperm.xlu0 %214, %v208
        %v216 = vpop.permute.xlu0 %215
        %219 = vset.pattern.permute.xlu0 0
        %220 = vperm.xlu0 %219, %v209
        %v221 = vpop.permute.xlu0 %220
        %v223 = vperm.slane %v212, 0
        %v224 = vmul.f32 %v216, %v223
        %v225 = vmul.f32 %v221, %v223
        %226 = vset.pattern.permute.xlu0 1
        %227 = vperm.xlu0 %226, %v208
        %v228 = vpop.permute.xlu0 %227
        %230 = vset.pattern.permute.xlu0 1
        %231 = vperm.xlu0 %230, %v209
        %v232 = vpop.permute.xlu0 %231
        %v234 = vperm.slane %v212, 1
        %v235 = vmul.f32 %v228, %v234
        %v236 = vmul.f32 %v232, %v234
        %v237 = vadd.f32 %v224, %v235
        %v238 = vadd.f32 %v225, %v236
        %v239 = vld [vmem:[#allocation2 + $0x8] sm:$0x1]
        %v240 = vperm.slane %v239, 0
        %vm241 = vcmask 130048
        %v243 = vsel %vm241, %v210, 0
        %v246 = vsel %vm241, %v211, 0
        %248 = vmatpush.msra.mxu0 0.0
        %249 = vmatpush.msra.mxu0 0.0
        %250 = vmatpush.msra.mxu0 0.0
        %251 = vmatpush.msra.mxu0 0.0
        %252 = vmatpush.msra.mxu0 0.0
        %253 = vmatpush.msra.mxu0 0.0
        %254 = vmatpush.msra.mxu0 0.0
        %255 = vmatpush.msra.mxu0 0.0
        %256 = vmatpush.msra.mxu0 0.0
        %257 = vmatpush.msra.mxu0 0.0
        %258 = vmatpush.msra.mxu0 0.0
        %259 = vmatpush.msra.mxu0 0.0
        %260 = vmatpush.msra.mxu0 0.0
        %261 = vmatpush.msra.mxu0 0.0
        %262 = vmatpush.msra.mxu0 %v238
        %263 = vmatpush.msra.mxu0 %v237
        %264 = vmatmul.f32.gmra.mxu0 %v243
        %v265 = vpop.f32.mrf.mxu0
        %v266 = vadd.f32 %v240, %v265
        %267 = vmatmul.f32.gmra.mxu0 %v246
        %v268 = vpop.f32.mrf.mxu0
        %v269 = vadd.f32 %v240, %v268
        %270 = vdwg.mxu0
        %v271 = vmax.f32 %v266, 0.0
        %v272 = vmax.f32 %v269, 0.0
        %v273 = vld [vmem:[#allocation2 + $0x10] sm:$0xff]
        %vm274 = vcmask 64512
        %v276 = vsel %vm274, %v271, 0
        %v279 = vsel %vm274, %v272, 0
        %281 = vmatpush.msra.mxu0 0.0
        %282 = vmatpush.msra.mxu0 0.0
        %283 = vmatpush.msra.mxu0 0.0
        %284 = vmatpush.msra.mxu0 0.0
        %285 = vmatpush.msra.mxu0 0.0
        %286 = vmatpush.msra.mxu0 0.0
        %287 = vmatpush.msra.mxu0 0.0
        %288 = vmatpush.msra.mxu0 0.0
        %289 = vmatpush.msra.mxu0 0.0
        %290 = vmatpush.msra.mxu0 0.0
        %291 = vmatpush.msra.mxu0 0.0
        %292 = vmatpush.msra.mxu0 0.0
        %293 = vmatpush.msra.mxu0 0.0
        %294 = vmatpush.msra.mxu0 0.0
        %295 = vmatpush.msra.mxu0 0.0
        %296 = vmatpush.msra.mxu0 %v273
        %297 = vmatmul.f32.gmra.mxu0 %v276
        %v298 = vpop.f32.mrf.mxu0
        %v299 = vadd.f32 0.0, %v298
        %300 = vmatmul.f32.gmra.mxu0 %v279
        %v301 = vpop.f32.mrf.mxu0
        %v302 = vadd.f32 0.0, %v301
        %303 = vdwg.mxu0
        %v304 = vld [vmem:[#allocation2 + $0x18] sm:$0x1]
        %v305 = vperm.slane %v304, 0
        %306 = vmatpush.msra.mxu0 0.0
        %307 = vmatpush.msra.mxu0 0.0
        %308 = vmatpush.msra.mxu0 0.0
        %309 = vmatpush.msra.mxu0 0.0
        %310 = vmatpush.msra.mxu0 0.0
        %311 = vmatpush.msra.mxu0 0.0
        %312 = vmatpush.msra.mxu0 0.0
        %313 = vmatpush.msra.mxu0 0.0
        %314 = vmatpush.msra.mxu0 0.0
        %315 = vmatpush.msra.mxu0 0.0
        %316 = vmatpush.msra.mxu0 0.0
        %317 = vmatpush.msra.mxu0 0.0
        %318 = vmatpush.msra.mxu0 0.0
        %319 = vmatpush.msra.mxu0 0.0
        %320 = vmatpush.msra.mxu0 %v302
        %321 = vmatpush.msra.mxu0 %v299
        %322 = vmatmul.f32.gmra.mxu0 %v243
        %v323 = vpop.f32.mrf.mxu0
        %v324 = vadd.f32 %v305, %v323
        %325 = vmatmul.f32.gmra.mxu0 %v246
        %v326 = vpop.f32.mrf.mxu0
        %v327 = vadd.f32 %v305, %v326
        %328 = vdwg.mxu0
        %v329 = vmax.f32 %v324, 0.0
        %v330 = vmax.f32 %v327, 0.0
        %v331 = vld [vmem:[#allocation2 + $0x20] sm:$0xff]
        %v332 = vld [vmem:[#allocation2 + $0x28] sm:$0xff]
        %v334 = vsel %vm241, %v329, 0
        %v337 = vsel %vm241, %v330, 0
        %339 = vmatpush.msra.mxu0 0.0
        %340 = vmatpush.msra.mxu0 0.0
        %341 = vmatpush.msra.mxu0 0.0
        %342 = vmatpush.msra.mxu0 0.0
        %343 = vmatpush.msra.mxu0 0.0
        %344 = vmatpush.msra.mxu0 0.0
        %345 = vmatpush.msra.mxu0 0.0
        %346 = vmatpush.msra.mxu0 0.0
        %347 = vmatpush.msra.mxu0 0.0
        %348 = vmatpush.msra.mxu0 0.0
        %349 = vmatpush.msra.mxu0 0.0
        %350 = vmatpush.msra.mxu0 0.0
        %351 = vmatpush.msra.mxu0 0.0
        %352 = vmatpush.msra.mxu0 0.0
        %353 = vmatpush.msra.mxu0 %v332
        %354 = vmatpush.msra.mxu0 %v331
        %355 = vmatmul.f32.gmra.mxu0 %v334
        %v356 = vpop.f32.mrf.mxu0
        %v357 = vadd.f32 0.0, %v356
        %358 = vmatmul.f32.gmra.mxu0 %v337
        %v359 = vpop.f32.mrf.mxu0
        %v360 = vadd.f32 0.0, %v359
        %361 = vdwg.mxu0
        %v362 = vld [vmem:[#allocation2 + $0x30] sm:$0x1]
        %v363 = vperm.slane %v362, 0
        %364 = vmatpush.msra.mxu0 0.0
        %365 = vmatpush.msra.mxu0 0.0
        %366 = vmatpush.msra.mxu0 0.0
        %367 = vmatpush.msra.mxu0 0.0
        %368 = vmatpush.msra.mxu0 0.0
        %369 = vmatpush.msra.mxu0 0.0
        %370 = vmatpush.msra.mxu0 0.0
        %371 = vmatpush.msra.mxu0 0.0
        %372 = vmatpush.msra.mxu0 0.0
        %373 = vmatpush.msra.mxu0 0.0
        %374 = vmatpush.msra.mxu0 0.0
        %375 = vmatpush.msra.mxu0 0.0
        %376 = vmatpush.msra.mxu0 0.0
        %377 = vmatpush.msra.mxu0 0.0
        %378 = vmatpush.msra.mxu0 %v360
        %379 = vmatpush.msra.mxu0 %v357
        %380 = vmatmul.f32.gmra.mxu0 %v243
        %v381 = vpop.f32.mrf.mxu0
        %v382 = vadd.f32 %v363, %v381
        %383 = vmatmul.f32.gmra.mxu0 %v246
        %v384 = vpop.f32.mrf.mxu0
        %v385 = vadd.f32 %v363, %v384
        %386 = vdwg.mxu0
        %v387 = vmax.f32 %v382, 0.0
        %v388 = vmax.f32 %v385, 0.0
        %v389 = vld [vmem:[#allocation2 + $0x38] sm:$0xff]
        %v390 = vld [vmem:[#allocation2 + $0x40] sm:$0xff]
        %v391 = vld [vmem:[#allocation2 + $0x48] sm:$0xff]
        %v392 = vld [vmem:[#allocation2 + $0x50] sm:$0xff]
        %v393 = vld [vmem:[#allocation2 + $0x58] sm:$0x1]
        %v394 = vperm.slane %v393, 0
        %vm395 = vcmask 261120
        %v397 = vsel %vm395, %v387, 0
        %v400 = vsel %vm395, %v388, 0
        %402 = vmatpush.msra.mxu0 0.0
        %403 = vmatpush.msra.mxu0 0.0
        %404 = vmatpush.msra.mxu0 0.0
        %405 = vmatpush.msra.mxu0 0.0
        %406 = vmatpush.msra.mxu0 0.0
        %407 = vmatpush.msra.mxu0 0.0
        %408 = vmatpush.msra.mxu0 0.0
        %409 = vmatpush.msra.mxu0 0.0
        %410 = vmatpush.msra.mxu0 0.0
        %411 = vmatpush.msra.mxu0 0.0
        %412 = vmatpush.msra.mxu0 0.0
        %413 = vmatpush.msra.mxu0 0.0
        %414 = vmatpush.msra.mxu0 %v392
        %415 = vmatpush.msra.mxu0 %v391
        %416 = vmatpush.msra.mxu0 %v390
        %417 = vmatpush.msra.mxu0 %v389
        %418 = vmatmul.f32.gmra.mxu0 %v397
        %v419 = vpop.f32.mrf.mxu0
        %v420 = vadd.f32 %v394, %v419
        %421 = vmatmul.f32.gmra.mxu0 %v400
        %v422 = vpop.f32.mrf.mxu0
        %v423 = vadd.f32 %v394, %v422
        %424 = vdwg.mxu0
        %v425 = vld [vmem:[#allocation2 + $0x60] sm:$0x1]
        %v426 = vld [vmem:[#allocation2 + $0x68] sm:$0x1]
        %v427 = vmul.f32 %v420, %v420
        %v428 = vmul.f32 %v423, %v423
        %431 = vrot.lane.b32.xlu0 %v427, 32
        %v432 = vpop.permute.xlu0 %431
        %433 = vrot.lane.b32.xlu0 %v428, 32
        %v434 = vpop.permute.xlu0 %433
        %v437 = vsel %vm395, %v420, %v432
        %v438 = vsel %vm395, %v423, %v434
        %vm439 = vcmask 523264
        %v440 = vsel %vm439, %v437, 0.0
        %v441 = vsel %vm439, %v438, 0.0
        %v442 = vadd.f32 %v440, %v441
        %v443 = vrot.slane %v442, 4
        %v444 = vadd.f32 %v442, %v443
        %v445 = vrot.slane %v444, 2
        %v446 = vadd.f32 %v444, %v445
        %v447 = vrot.slane %v446, 1
        %v448 = vadd.f32 %v446, %v447
        %v449 = vmul.f32 %v448, 0.0625
        %v450 = vmul.f32 %v449, %v449
        %452 = vrot.lane.b32.xlu0 %v450, 32
        %v453 = vpop.permute.xlu0 %452
        %v455 = vsub.f32 %v449, %v453
        %v456 = vsub.f32 %v420, %v449
        %v457 = vsub.f32 %v423, %v449
        %v458 = vadd.f32 %v455, 1e-05
        %v459 = vrsqrt.pop %v458
        %v460 = vmul.f32 %v459, %v458
        %v461 = vmul.f32 %v460, %v459
        %v462 = vmul.f32 0.5, %v461
        %v463 = vsub.f32 1.5, %v462
        %v464 = vmul.f32 %v459, %v463
        %vm465 = vweird.f32 %v458
        %vm466 = vweird.f32 %v459
        %vm467 = vmor %vm465, %vm466
        %v468 = vsel %vm467, %v459, %v464
        %v469 = vperm.slane %v468, 0
        %471 = vrot.lane.b32.xlu0 %v469, 96
        %v472 = vpop.permute.xlu0 %471
        %v474 = vmul.f32 %v456, %v472
        %v475 = vmul.f32 %v457, %v472
        %v476 = vperm.slane %v425, 0
        %v477 = vmul.f32 %v474, %v476
        %v478 = vmul.f32 %v475, %v476
        %v479 = vperm.slane %v426, 0
        %v480 = vadd.f32 %v477, %v479
        %v481 = vadd.f32 %v478, %v479
        %v482 = vmax.f32 %v480, 0.0
        %v483 = vmax.f32 %v481, 0.0
        %v484 = vld [vmem:[#allocation2 + $0x70] sm:$0xff]
        %v485 = vld [vmem:[#allocation2 + $0x78] sm:$0xff]
        %v486 = vld [vmem:[#allocation2 + $0x80] sm:$0xff]
        %v487 = vld [vmem:[#allocation2 + $0x88] sm:$0xff]
        %v488 = vld [vmem:[#allocation2 + $0x90] sm:$0x1]
        %v489 = vperm.slane %v488, 0
        %v491 = vsel %vm395, %v482, 0
        %v494 = vsel %vm395, %v483, 0
        %496 = vmatpush.msra.mxu0 0.0
        %497 = vmatpush.msra.mxu0 0.0
        %498 = vmatpush.msra.mxu0 0.0
        %499 = vmatpush.msra.mxu0 0.0
        %500 = vmatpush.msra.mxu0 0.0
        %501 = vmatpush.msra.mxu0 0.0
        %502 = vmatpush.msra.mxu0 0.0
        %503 = vmatpush.msra.mxu0 0.0
        %504 = vmatpush.msra.mxu0 0.0
        %505 = vmatpush.msra.mxu0 0.0
        %506 = vmatpush.msra.mxu0 0.0
        %507 = vmatpush.msra.mxu0 0.0
        %508 = vmatpush.msra.mxu0 %v487
        %509 = vmatpush.msra.mxu0 %v486
        %510 = vmatpush.msra.mxu0 %v485
        %511 = vmatpush.msra.mxu0 %v484
        %512 = vmatmul.f32.gmra.mxu0 %v491
        %v513 = vpop.f32.mrf.mxu0
        %v514 = vadd.f32 %v489, %v513
        %515 = vmatmul.f32.gmra.mxu0 %v494
        %v516 = vpop.f32.mrf.mxu0
        %v517 = vadd.f32 %v489, %v516
        %518 = vdwg.mxu0
        %v519 = vld [vmem:[#allocation2 + $0x98] sm:$0x1]
        %v520 = vld [vmem:[#allocation2 + $0xa0] sm:$0x1]
        %v521 = vmul.f32 %v514, %v514
        %v522 = vmul.f32 %v517, %v517
        %525 = vrot.lane.b32.xlu0 %v521, 32
        %v526 = vpop.permute.xlu0 %525
        %527 = vrot.lane.b32.xlu0 %v522, 32
        %v528 = vpop.permute.xlu0 %527
        %v531 = vsel %vm395, %v514, %v526
        %v532 = vsel %vm395, %v517, %v528
        %v533 = vsel %vm439, %v531, 0.0
        %v534 = vsel %vm439, %v532, 0.0
        %v535 = vadd.f32 %v533, %v534
        %v536 = vrot.slane %v535, 4
        %v537 = vadd.f32 %v535, %v536
        %v538 = vrot.slane %v537, 2
        %v539 = vadd.f32 %v537, %v538
        %v540 = vrot.slane %v539, 1
        %v541 = vadd.f32 %v539, %v540
        %v542 = vmul.f32 %v541, 0.0625
        %v543 = vmul.f32 %v542, %v542
        %545 = vrot.lane.b32.xlu0 %v543, 32
        %v546 = vpop.permute.xlu0 %545
        %v548 = vsub.f32 %v542, %v546
        %v549 = vsub.f32 %v514, %v542
        %v550 = vsub.f32 %v517, %v542
        %v551 = vadd.f32 %v548, 1e-05
        %v552 = vrsqrt.pop %v551
        %v553 = vmul.f32 %v552, %v551
        %v554 = vmul.f32 %v553, %v552
        %v555 = vmul.f32 0.5, %v554
        %v556 = vsub.f32 1.5, %v555
        %v557 = vmul.f32 %v552, %v556
        %vm558 = vweird.f32 %v551
        %vm559 = vweird.f32 %v552
        %vm560 = vmor %vm558, %vm559
        %v561 = vsel %vm560, %v552, %v557
        %v562 = vperm.slane %v561, 0
        %564 = vrot.lane.b32.xlu0 %v562, 96
        %v565 = vpop.permute.xlu0 %564
        %v567 = vmul.f32 %v549, %v565
        %v568 = vmul.f32 %v550, %v565
        %v569 = vperm.slane %v519, 0
        %v570 = vmul.f32 %v567, %v569
        %v571 = vmul.f32 %v568, %v569
        %v572 = vperm.slane %v520, 0
        %v573 = vadd.f32 %v570, %v572
        %v574 = vadd.f32 %v571, %v572
        %v575 = vmax.f32 %v573, 0.0
        %v576 = vmax.f32 %v574, 0.0
        %v577 = vld [vmem:[#allocation2 + $0xa8] sm:$0xff]
        %v578 = vld [vmem:[#allocation2 + $0xb0] sm:$0xff]
        %v579 = vld [vmem:[#allocation2 + $0xb8] sm:$0xff]
        %v580 = vld [vmem:[#allocation2 + $0xc0] sm:$0xff]
        %v581 = vld [vmem:[#allocation2 + $0xc8] sm:$0x1]
        %v582 = vperm.slane %v581, 0
        %v584 = vsel %vm395, %v575, 0
        %v587 = vsel %vm395, %v576, 0
        %589 = vmatpush.msra.mxu0 0.0
        %590 = vmatpush.msra.mxu0 0.0
        %591 = vmatpush.msra.mxu0 0.0
        %592 = vmatpush.msra.mxu0 0.0
        %593 = vmatpush.msra.mxu0 0.0
        %594 = vmatpush.msra.mxu0 0.0
        %595 = vmatpush.msra.mxu0 0.0
        %596 = vmatpush.msra.mxu0 0.0
        %597 = vmatpush.msra.mxu0 0.0
        %598 = vmatpush.msra.mxu0 0.0
        %599 = vmatpush.msra.mxu0 0.0
        %600 = vmatpush.msra.mxu0 0.0
        %601 = vmatpush.msra.mxu0 %v580
        %602 = vmatpush.msra.mxu0 %v579
        %603 = vmatpush.msra.mxu0 %v578
        %604 = vmatpush.msra.mxu0 %v577
        %605 = vmatmul.f32.gmra.mxu0 %v584
        %v606 = vpop.f32.mrf.mxu0
        %v607 = vadd.f32 %v582, %v606
        %608 = vmatmul.f32.gmra.mxu0 %v587
        %v609 = vpop.f32.mrf.mxu0
        %v610 = vadd.f32 %v582, %v609
        %611 = vdwg.mxu0
        %v612 = vld [vmem:[#allocation2 + $0xd0] sm:$0x1]
        %v613 = vld [vmem:[#allocation2 + $0xd8] sm:$0x1]
        %v614 = vmul.f32 %v607, %v607
        %v615 = vmul.f32 %v610, %v610
        %618 = vrot.lane.b32.xlu0 %v614, 16
        %v619 = vpop.permute.xlu0 %618
        %620 = vrot.lane.b32.xlu0 %v615, 16
        %v621 = vpop.permute.xlu0 %620
        %v624 = vsel %vm241, %v607, %v619
        %v625 = vsel %vm241, %v610, %v621
        %v626 = vsel %vm395, %v624, 0.0
        %v627 = vsel %vm395, %v625, 0.0
        %v628 = vadd.f32 %v626, %v627
        %v629 = vrot.slane %v628, 4
        %v630 = vadd.f32 %v628, %v629
        %v631 = vrot.slane %v630, 2
        %v632 = vadd.f32 %v630, %v631
        %v633 = vrot.slane %v632, 1
        %v634 = vadd.f32 %v632, %v633
        %v635 = vmul.f32 %v634, 0.0625
        %v636 = vmul.f32 %v635, %v635
        %638 = vrot.lane.b32.xlu0 %v636, 16
        %v639 = vpop.permute.xlu0 %638
        %v641 = vsub.f32 %v635, %v639
        %v642 = vsub.f32 %v607, %v635
        %v643 = vsub.f32 %v610, %v635
        %v644 = vadd.f32 %v641, 1e-05
        %v645 = vrsqrt.pop %v644
        %v646 = vmul.f32 %v645, %v644
        %v647 = vmul.f32 %v646, %v645
        %v648 = vmul.f32 0.5, %v647
        %v649 = vsub.f32 1.5, %v648
        %v650 = vmul.f32 %v645, %v649
        %vm651 = vweird.f32 %v644
        %vm652 = vweird.f32 %v645
        %vm653 = vmor %vm651, %vm652
        %v654 = vsel %vm653, %v645, %v650
        %v655 = vperm.slane %v654, 0
        %657 = vrot.lane.b32.xlu0 %v655, 112
        %v658 = vpop.permute.xlu0 %657
        %v660 = vmul.f32 %v642, %v658
        %v661 = vmul.f32 %v643, %v658
        %v662 = vperm.slane %v612, 0
        %v663 = vmul.f32 %v660, %v662
        %v664 = vmul.f32 %v661, %v662
        %v665 = vperm.slane %v613, 0
        %v666 = vadd.f32 %v663, %v665
        %v667 = vadd.f32 %v664, %v665
        %v668 = vsel %vm241, %v666, -inf
        %v669 = vsel %vm241, %v667, -inf
        %v670 = vmax.f32 %v668, %v669
        %v671 = vrot.slane %v670, 4
        %v672 = vmax.f32 %v670, %v671
        %v673 = vrot.slane %v672, 2
        %v674 = vmax.f32 %v672, %v673
        %v675 = vrot.slane %v674, 1
        %v676 = vmax.f32 %v674, %v675
        %v677 = vld [vmem:[#allocation2 + $0xe0] sm:$0xff]
        %v678 = vld [vmem:[#allocation2 + $0xe8] sm:$0xff]
        %v679 = vld [vmem:[#allocation2 + $0xf0] sm:$0xff]
        %v680 = vld [vmem:[#allocation2 + $0xf8] sm:$0xff]
        %v681 = vmul.f32 %v677, %v676
        %v682 = vmul.f32 %v678, %v676
        %v683 = vmul.f32 %v679, %v676
        %v684 = vmul.f32 %v680, %v676
        %v685 = vsel %vm241, %v681, 0.0
        %686 = vadd.xlane.f32.xlu0 %v685
        %v687 = vpop.xlane.xlu0 %686
        %v688 = vsel %vm241, %v682, 0.0
        %689 = vadd.xlane.f32.xlu0 %v688
        %v690 = vpop.xlane.xlu0 %689
        %v691 = vsel %vm241, %v683, 0.0
        %692 = vadd.xlane.f32.xlu0 %v691
        %v693 = vpop.xlane.xlu0 %692
        %v694 = vsel %vm241, %v684, 0.0
        %695 = vadd.xlane.f32.xlu0 %v694
        %v696 = vpop.xlane.xlu0 %695
        %v697 = vld [vmem:[#allocation2 + $0x100] sm:$0xff]
        %v698 = vld [vmem:[#allocation2 + $0x108] sm:$0xff]
        %v699 = vld [vmem:[#allocation2 + $0x110] sm:$0xff]
        %v700 = vld [vmem:[#allocation2 + $0x118] sm:$0xff]
        %v701 = vadd.f32 %v687, %v697
        %v702 = vadd.f32 %v690, %v698
        %v703 = vadd.f32 %v693, %v699
        %v704 = vadd.f32 %v696, %v700
        %v705 = vmax.f32 %v701, 0.0
        %v706 = vmax.f32 %v702, 0.0
        %v707 = vmax.f32 %v703, 0.0
        %v708 = vmax.f32 %v704, 0.0
        %v709 = vld [vmem:[#allocation2 + $0x120] sm:$0xff]
        %v710 = vld [vmem:[#allocation2 + $0x128] sm:$0xff]
        %v711 = vld [vmem:[#allocation2 + $0x130] sm:$0xff]
        %v712 = vld [vmem:[#allocation2 + $0x138] sm:$0xff]
        %714 = vset.pattern.permute.xlu0 0
        %715 = vperm.xlu0 %714, %v705
        %v716 = vpop.permute.xlu0 %715
        %719 = vset.pattern.permute.xlu0 0
        %720 = vperm.xlu0 %719, %v706
        %v721 = vpop.permute.xlu0 %720
        %724 = vset.pattern.permute.xlu0 0
        %725 = vperm.xlu0 %724, %v707
        %v726 = vpop.permute.xlu0 %725
        %729 = vset.pattern.permute.xlu0 0
        %730 = vperm.xlu0 %729, %v708
        %v731 = vpop.permute.xlu0 %730
        %v733 = vmul.f32 %v716, %v709
        %v734 = vmul.f32 %v721, %v710
        %v735 = vmul.f32 %v726, %v711
        %v736 = vmul.f32 %v731, %v712
        %v737 = vsel %vm395, %v733, 0.0
        %v738 = vsel %vm395, %v734, 0.0
        %v739 = vadd.f32 %v737, %v738
        %v740 = vsel %vm395, %v735, 0.0
        %v741 = vadd.f32 %v739, %v740
        %v742 = vsel %vm395, %v736, 0.0
        %v743 = vadd.f32 %v741, %v742
        %v744 = vrot.slane %v743, 4
        %v745 = vadd.f32 %v743, %v744
        %v746 = vrot.slane %v745, 2
        %v747 = vadd.f32 %v745, %v746
        %v748 = vrot.slane %v747, 1
        %v749 = vadd.f32 %v747, %v748
        %v750 = vld [vmem:[#allocation2 + $0x140] sm:$0x1]
        %v751 = vadd.f32 %v749, %v750
        %v752 = vmax.f32 %v751, 0.0
        %v753 = vld [vmem:[#allocation2 + $0x148] sm:$0xff]
        %v754 = vld [vmem:[#allocation2 + $0x150] sm:$0xff]
        %v755 = vld [vmem:[#allocation2 + $0x158] sm:$0xff]
        %v756 = vld [vmem:[#allocation2 + $0x160] sm:$0xff]
        %v757 = vperm.slane %v752, 0
        %v758 = vmul.f32 %v753, %v757
        %v759 = vmul.f32 %v754, %v757
        %v760 = vmul.f32 %v755, %v757
        %v761 = vmul.f32 %v756, %v757
        %v762 = vsel %vm395, %v758, 0.0
        %763 = vadd.xlane.f32.xlu0 %v762
        %v764 = vpop.xlane.xlu0 %763
        %v765 = vsel %vm395, %v759, 0.0
        %766 = vadd.xlane.f32.xlu0 %v765
        %v767 = vpop.xlane.xlu0 %766
        %v768 = vsel %vm395, %v760, 0.0
        %769 = vadd.xlane.f32.xlu0 %v768
        %v770 = vpop.xlane.xlu0 %769
        %v771 = vsel %vm395, %v761, 0.0
        %772 = vadd.xlane.f32.xlu0 %v771
        %v773 = vpop.xlane.xlu0 %772
        %v774 = vld [vmem:[#allocation2 + $0x168] sm:$0xff]
        %v775 = vld [vmem:[#allocation2 + $0x170] sm:$0xff]
        %v776 = vld [vmem:[#allocation2 + $0x178] sm:$0xff]
        %v777 = vld [vmem:[#allocation2 + $0x180] sm:$0xff]
        %v778 = vadd.f32 %v764, %v774
        %v779 = vadd.f32 %v767, %v775
        %v780 = vadd.f32 %v770, %v776
        %v781 = vadd.f32 %v773, %v777
        %vm782 = vcmask 7168
        %783 = vst.msk [vmem:[%s207] sm:$0xff] %vm782, %v778
        %784 = vst.msk [vmem:[%s207 + $0x8] sm:$0xff] %vm782, %v779
        %785 = vst.msk [vmem:[%s207 + $0x10] sm:$0xff] %vm782, %v780
        %786 = vst.msk [vmem:[%s207 + $0x18] sm:$0xff] %vm782, %v781
        %p787 = scmp.lt.s32.totalorder %s15, 1
        %s788 = scalar_select %p787, %s15, 1
        %s789 = smul.addr %s788, 4
        %s790 = smul.addr %s789, 8
        %s791 = scalar_lea.vmem %s3, %s790
        // Predicated region
        $region37: #{pointcloud_ae_forward.1} parent=31 // pred_check
          %p792 = pneg %p106
        $region38: #{pointcloud_ae_forward.1} parent=31 // pred_check_branch
          %794 = sbr.rel (%p792) target = $region40
        $region39: #{pointcloud_ae_forward.1} parent=31 // pred_region
          _
        $region40: #{pointcloud_ae_forward.1} parent=31 // pred_fallthru
          _
      $region32: #{pointcloud_ae_forward.1} parent=5 // pred_fallthru
        _
      %p795 = scmp.le.s32.totalorder 2, %s10
      // Predicated region
      $region41: #{pointcloud_ae_forward.1} parent=5 // pred_check
        %p796 = pneg %p795
      $region42: #{pointcloud_ae_forward.1} parent=5 // pred_check_branch
        %798 = sbr.rel (%p796) target = $region44
      $region43: #{pointcloud_ae_forward.1} parent=5 // pred_region
        %s799 = ssub.s32 %s10, 2
        // Predicated region
        $region45: #{pointcloud_ae_forward.1} parent=43 // pred_check
          %p800 = pneg %p112
        $region46: #{pointcloud_ae_forward.1} parent=43 // pred_check_branch
          %802 = sbr.rel (%p800) target = $region48
        $region47: #{pointcloud_ae_forward.1} parent=43 // pred_region
          %p803 = scmp.lt.s32.totalorder %s16, 1
          %s804 = scalar_select %p803, %s16, 1
          %s805 = smul.addr %s804, 4
          %s806 = smul.addr %s805, 8
          %s807 = scalar_lea.vmem %s3, %s806
        $region48: #{pointcloud_ae_forward.1} parent=43 // pred_fallthru
          _
      $region44: #{pointcloud_ae_forward.1} parent=5 // pred_fallthru
        _
    $region6: #{pointcloud_ae_forward.1} parent=1 // loop_footer
      %s14 = sadd.s32 1, %s10
    $region7: #{pointcloud_ae_forward.1} parent=1 // loop_footer_branch
      %9 = sbr.rel target = $region3
    $region8: #{pointcloud_ae_forward.1} parent=1 // loop_exit
      _
    %808 = vsyncpa [#allocation3], 1
    %s809 = scalar_lea.sflag [#allocation3], 1
    %810 = vsyncpa %s809, 1

</llo_original>
